<compile_context>
chip_gen: v6e
topology: v6e:2x2x1
jax: 0.10.0
libtpu: 0.0.40
codegen_flags: <defaults>
</compile_context>

<pallas_src>
import jax
import jax.numpy as jnp
from jax.experimental import pallas as pl
from jax.experimental.pallas import tpu as pltpu

IN_FEATURES = 250
HIDDEN = 50
OUT_FEATURES = 1

# Batch-tile cap that double-buffers comfortably on every generation:
#   bf16 x tile = 250 * 4096 * 2 B = 2 MiB (x2 buffers), plus tiny weights.
# v6e (128 MiB VMEM) could raise this to 8192-16384 for slightly more overlap.
_DEFAULT_TB = 4096


def _mlp_kernel(xt_ref, w1_ref, w2_ref, b2_ref, o_ref):
    # xt_ref: [250, TB] (bf16 or f32)   w1_ref: [50, 250] (same dtype as xt)
    # w2_ref: [1, 50]   f32             b2_ref: [1] f32 (SMEM scalar)
    # o_ref : [1, TB]   f32 (lane-dense)
    h = jnp.dot(w1_ref[...], xt_ref[...],
                preferred_element_type=jnp.float32)        # [50, TB] f32 (MXU)
    h = jax.nn.sigmoid(h)                                  # f32 on VPU/EUP
    out = jnp.dot(w2_ref[...], h,
                  preferred_element_type=jnp.float32)      # [1, TB] lane-dense
    o_ref[...] = (out + b2_ref[0]).astype(o_ref.dtype)


def mlp_regression_forward(x, w1, w2, b2, *, use_bf16=True, tb=_DEFAULT_TB):
    """Fused forward pass of MLPregression.

    x : [B, 250] f32   (module input)
    w1: [50, 250] f32  (hidden1.weight, PyTorch layout, used as-is)
    w2: [1, 50]  f32   (predict.weight, used as-is)
    b2: [1]      f32   (predict.bias)
    returns [B, 1] f32
    """
    B = x.shape[0]
    # Pad the batch to a lane-aligned multiple of the tile size.
    b_pad = ((B + 127) // 128) * 128
    tb = min(tb, b_pad)
    b_pad = ((b_pad + tb - 1) // tb) * tb
    grid = (b_pad // tb,)

    compute_dtype = jnp.bfloat16 if use_bf16 else jnp.float32
    x_pad = jnp.pad(x, ((0, b_pad - B), (0, 0)))
    xt = jnp.transpose(x_pad).astype(compute_dtype)        # [250, b_pad] (wrapper-side layout)
    w1c = w1.astype(compute_dtype)                         # [50, 250]
    w2f = w2.astype(jnp.float32)                           # [1, 50]
    b2f = b2.reshape((OUT_FEATURES,)).astype(jnp.float32)  # scalar -> SMEM

    out_t = pl.pallas_call(
        _mlp_kernel,
        out_shape=jax.ShapeDtypeStruct((OUT_FEATURES, b_pad), jnp.float32),
        grid_spec=pl.GridSpec(
            grid=grid,
            in_specs=[
                pl.BlockSpec((IN_FEATURES, tb), lambda i: (0, i)),        # x tile (streamed)
                pl.BlockSpec((HIDDEN, IN_FEATURES), lambda i: (0, 0)),    # w1 resident
                pl.BlockSpec((OUT_FEATURES, HIDDEN), lambda i: (0, 0)),   # w2 resident
                pl.BlockSpec(memory_space=pltpu.MemorySpace.SMEM),        # b2 scalar
            ],
            out_specs=pl.BlockSpec((OUT_FEATURES, tb), lambda i: (0, i)),
        ),
        compiler_params=pltpu.CompilerParams(
            dimension_semantics=("parallel",),      # v7x: shard tiles over both TCs
            vmem_limit_bytes=32 * 1024 * 1024,      # safe on v5e / v6e / v7x
        ),
    )(xt, w1c, w2f, b2f)

    return jnp.transpose(out_t[:, :B])              # [B, 1]


def init_params(key):
    """Deterministic synthetic parameters in native PyTorch layouts."""
    k1, k2, k3 = jax.random.split(key, 3)
    w1 = jax.random.normal(k1, (HIDDEN, IN_FEATURES), jnp.float32) * 0.05   # hidden1.weight
    w2 = jax.random.normal(k2, (OUT_FEATURES, HIDDEN), jnp.float32) * 0.1   # predict.weight
    b2 = jax.random.normal(k3, (OUT_FEATURES,), jnp.float32) * 0.1          # predict.bias
    return w1, w2, b2


def reference_forward(x, w1, w2, b2):
    h = jax.nn.sigmoid(x @ w1.T)
    return h @ w2.T + b2


if __name__ == "__main__":
    key = jax.random.PRNGKey(0)
    kx, kp = jax.random.split(key)

    B = 8
    x = jax.random.normal(kx, (B, IN_FEATURES), jnp.float32)
    w1, w2, b2 = init_params(kp)

    ref = reference_forward(x, w1, w2, b2)

    # Exact-f32 path: tight check against the reference.
    out_f32 = jax.block_until_ready(
        mlp_regression_forward(x, w1, w2, b2, use_bf16=False))
    assert out_f32.shape == (B, OUT_FEATURES)
    assert jnp.allclose(out_f32, ref, atol=1e-4, rtol=1e-4), "f32 mismatch vs reference"

    # Default bf16-streamed path (halves HBM bytes): looser tolerance.
    out_bf16 = jax.block_until_ready(mlp_regression_forward(x, w1, w2, b2))
    assert out_bf16.shape == (B, OUT_FEATURES)
    assert jnp.allclose(out_bf16, ref, atol=2e-2, rtol=2e-2), "bf16 mismatch vs reference"

    print("KERNEL_OK")
</pallas_src>

<mosaic_0001>
module attributes {stable_mosaic.version = 11 : i64} {
  func.func @_mlp_kernel(%arg0: i32, %arg1: memref<250x128xf32, #tpu.memory_space<vmem>>, %arg2: memref<50x250xf32, #tpu.memory_space<vmem>>, %arg3: memref<1x50xf32, #tpu.memory_space<vmem>>, %arg4: memref<1xf32, #tpu.memory_space<smem>>, %arg5: memref<1x128xf32, #tpu.memory_space<vmem>>) attributes {dimension_semantics = [#tpu.dimension_semantics<parallel>], iteration_bounds = array<i64: 1>, scalar_prefetch = 0 : i64, scratch_operands = 0 : i64, tpu.core_type = #tpu.core_type<tc>, window_params = [{transform_indices = @transform_0, window_bounds = array<i64: 250, 128>}, {pipeline_mode = #tpu.pipeline_mode<synchronous>, transform_indices = @transform_1, window_bounds = array<i64: 50, 250>}, {pipeline_mode = #tpu.pipeline_mode<synchronous>, transform_indices = @transform_2, window_bounds = array<i64: 1, 50>}, {transform_indices = @transform_3, window_bounds = array<i64: 1>}, {transform_indices = @transform_4, window_bounds = array<i64: 1, 128>}]} {
    %c0 = arith.constant 0 : index
    %c0_0 = arith.constant 0 : index
    %0 = vector.load %arg2[%c0, %c0_0] : memref<50x250xf32, #tpu.memory_space<vmem>>, vector<50x250xf32>
    %c0_1 = arith.constant 0 : index
    %c0_2 = arith.constant 0 : index
    %1 = vector.load %arg1[%c0_1, %c0_2] : memref<250x128xf32, #tpu.memory_space<vmem>>, vector<250x128xf32>
    %cst = arith.constant dense<0.000000e+00> : vector<50x128xf32>
    %2 = tpu.matmul %0, %1, %cst {dimension_numbers = #tpu.dot_dimension_numbers<[1], [0], [0], [1], [0, 0, 1, 1], [], []>} : vector<50x250xf32>, vector<250x128xf32>, vector<50x128xf32> -> vector<50x128xf32>
    %3 = arith.negf %2 : vector<50x128xf32>
    %4 = math.exp %3 : vector<50x128xf32>
    %cst_3 = arith.constant 1.000000e+00 : f32
    %5 = vector.broadcast %cst_3 : f32 to vector<50x128xf32>
    %6 = arith.addf %5, %4 : vector<50x128xf32>
    %7 = arith.divf %5, %6 : vector<50x128xf32>
    %c0_4 = arith.constant 0 : index
    %c0_5 = arith.constant 0 : index
    %8 = vector.load %arg3[%c0_4, %c0_5] : memref<1x50xf32, #tpu.memory_space<vmem>>, vector<1x50xf32>
    %cst_6 = arith.constant dense<0.000000e+00> : vector<1x128xf32>
    %9 = tpu.matmul %8, %7, %cst_6 {dimension_numbers = #tpu.dot_dimension_numbers<[1], [0], [0], [1], [0, 0, 1, 1], [], []>} : vector<1x50xf32>, vector<50x128xf32>, vector<1x128xf32> -> vector<1x128xf32>
    %c0_7 = arith.constant 0 : index
    %10 = memref.load %arg4[%c0_7] : memref<1xf32, #tpu.memory_space<smem>>
    %11 = vector.broadcast %10 : f32 to vector<1x128xf32>
    %12 = arith.addf %9, %11 : vector<1x128xf32>
    %c0_8 = arith.constant 0 : index
    %c0_9 = arith.constant 0 : index
    %13 = vector.load %arg5[%c0_8, %c0_9] : memref<1x128xf32, #tpu.memory_space<vmem>>, vector<1x128xf32>
    tpu.vector_store %arg5[%c0_8, %c0_9], %12 {strides = array<i32>} : memref<1x128xf32, #tpu.memory_space<vmem>>, vector<1x128xf32>,
    return
  }
  func.func @transform_0(%arg0: i32) -> (i32, i32) {
    %c0_i32 = arith.constant 0 : i32
    %c0_i32_0 = arith.constant 0 : i32
    return %c0_i32, %arg0 : i32, i32
  }
  func.func @transform_1(%arg0: i32) -> (i32, i32) {
    %c0_i32 = arith.constant 0 : i32
    %c0_i32_0 = arith.constant 0 : i32
    %c0_i32_1 = arith.constant 0 : i32
    return %c0_i32, %c0_i32_0 : i32, i32
  }
  func.func @transform_2(%arg0: i32) -> (i32, i32) {
    %c0_i32 = arith.constant 0 : i32
    %c0_i32_0 = arith.constant 0 : i32
    %c0_i32_1 = arith.constant 0 : i32
    return %c0_i32, %c0_i32_0 : i32, i32
  }
  func.func @transform_3(%arg0: i32) -> i32 {
    %c0_i32 = arith.constant 0 : i32
    %c0_i32_0 = arith.constant 0 : i32
    return %c0_i32 : i32
  }
  func.func @transform_4(%arg0: i32) -> (i32, i32) {
    %c0_i32 = arith.constant 0 : i32
    %c0_i32_0 = arith.constant 0 : i32
    return %c0_i32, %arg0 : i32, i32
  }
}

</mosaic_0001>

<llo_original>
// kernel: tpu_custom_call.1
$region0: #{tpu_custom_call.1}
  #allocation0 [shape = 'u32[]', space=smem, size = 0x4, offset = 0x4, fixed_abs, tag = 'smem constant byte address 0x4 - core index']
  #allocation1 [shape = 'u32[144,128]{1,0:T(1,128)}', space=vmem, size = 0x12000, scoped, tag = 'internal scratch']
  #allocation2 [shape = 'f32[1]{0:T(128)S(6)}', space=smem, size = 0x200, scoped, tag = 'scoped memory for tpu_custom_call.1']
  %s0 = inlined_call_operand.hbm [shape: f32[250,128], index: 0, kind: input, shape index: {}]
  %s1 = inlined_call_operand.hbm [shape: f32[50,250], index: 1, kind: input, shape index: {}]
  %s2 = inlined_call_operand.vmem [shape: f32[1,50], index: 2, kind: input, shape index: {}]
  %s3 = inlined_call_operand.<no memory space> [shape: f32[1], index: 3, kind: input, shape index: {}]
  %s4 = inlined_call_operand.hbm [shape: f32[1,128], index: 4, kind: output, shape index: {}]
  %s5 = sld [smem:[#allocation0]]
  $region34: #{tpu_custom_call.1} parent=0
    _
  %s7 = ssub.s32 1, %s5
  %s8 = scalar_select 0, %s7, %s5
  %9 = sst [smem:[#allocation2]] %s3
  $region1: #{tpu_custom_call.1} parent=0
    #allocation3 [shape = 'u8[131072]{0}', space=vmem, size = 0x20000, scoped, tag = 'input window, operand 0, single buffered']
    #allocation4 [shape = 's32[1]{0}', space=sflag, size = 0x4, scoped, tag = 'scoped memory for tpu_custom_call.1']
    #allocation5 [shape = 's32[1]{0}', space=sflag, size = 0x4, scoped, tag = 'scoped memory for tpu_custom_call.1']
    #allocation6 [shape = 'u8[57344]{0}', space=vmem, size = 0xe000, scoped, tag = 'input window, operand 1, single buffered']
    #allocation7 [shape = 's32[1]{0}', space=sflag, size = 0x4, scoped, tag = 'scoped memory for tpu_custom_call.1']
    #allocation8 [shape = 'u8[512]{0}', space=vmem, size = 0x400, scoped, tag = 'output window, operand 0, single buffered']
    %10 = vsyncpa [#allocation4], 0
    %11 = vsyncpa [#allocation7], 0
    %12 = vsyncpa [#allocation5], 0
    // Predicated region
    $region2: #{tpu_custom_call.1} parent=1 // pred_check
      _
    $region3: #{tpu_custom_call.1} parent=1 // pred_check_branch
      %14 = sbr.rel (0) target = $region5
    $region4: #{tpu_custom_call.1} parent=1 // pred_region
      %s16 = ssub.s32 4096, 4096
      %17 = vsyncadd [#allocation4], %s16
      %s18 = sshll.u32 [#allocation3], 4
      %s19 = int_to_ptr.vmem [resolvable:$true] %s18
      %24 = dma.hbm_to_vmem [thread:$0]  %s0, 4096, %s19, [#allocation4], 128, 128, 8
    $region5: #{tpu_custom_call.1} parent=1 // pred_fallthru
      _
    // Predicated region
    $region6: #{tpu_custom_call.1} parent=1 // pred_check
      _
    $region7: #{tpu_custom_call.1} parent=1 // pred_check_branch
      %26 = sbr.rel (0) target = $region9
    $region8: #{tpu_custom_call.1} parent=1 // pred_region
      %s28 = ssub.s32 1792, 1792
      %29 = vsyncadd [#allocation7], %s28
      %s30 = sshll.u32 [#allocation6], 4
      %s31 = int_to_ptr.vmem [resolvable:$true] %s30
      %36 = dma.hbm_to_vmem [thread:$0]  %s1, 1792, %s31, [#allocation7], 256, 256, 16
    $region9: #{tpu_custom_call.1} parent=1 // pred_fallthru
      _
    // Predicated region
    $region10: #{tpu_custom_call.1} parent=1 // pred_check
      _
    $region11: #{tpu_custom_call.1} parent=1 // pred_check_branch
      %38 = sbr.rel (0) target = $region13
    $region12: #{tpu_custom_call.1} parent=1 // pred_region
      _
    $region13: #{tpu_custom_call.1} parent=1 // pred_fallthru
      _
    // Predicated region
    $region14: #{tpu_custom_call.1} parent=1 // pred_check
      _
    $region15: #{tpu_custom_call.1} parent=1 // pred_check_branch
      %40 = sbr.rel (0) target = $region17
    $region16: #{tpu_custom_call.1} parent=1 // pred_region
      _
    $region17: #{tpu_custom_call.1} parent=1 // pred_fallthru
      _
    // Predicated region
    $region18: #{tpu_custom_call.1} parent=1 // pred_check
      _
    $region19: #{tpu_custom_call.1} parent=1 // pred_check_branch
      %42 = sbr.rel (0) target = $region21
    $region20: #{tpu_custom_call.1} parent=1 // pred_region
      %43 = dma.done [#allocation4], 4096
    $region21: #{tpu_custom_call.1} parent=1 // pred_fallthru
      _
    // Predicated region
    $region22: #{tpu_custom_call.1} parent=1 // pred_check
      _
    $region23: #{tpu_custom_call.1} parent=1 // pred_check_branch
      %45 = sbr.rel (0) target = $region25
    $region24: #{tpu_custom_call.1} parent=1 // pred_region
      %46 = dma.done [#allocation7], 1792
    $region25: #{tpu_custom_call.1} parent=1 // pred_fallthru
      _
    %v47 = vld [vmem:[#allocation6] sm:$0xff]
    %v48 = vld [vmem:[#allocation6 + $0x8] sm:$0xff]
    %v49 = vld [vmem:[#allocation6 + $0x10] sm:$0xff]
    %v50 = vld [vmem:[#allocation6 + $0x18] sm:$0xff]
    %v51 = vld [vmem:[#allocation6 + $0x20] sm:$0xff]
    %v52 = vld [vmem:[#allocation6 + $0x28] sm:$0xff]
    %v53 = vld [vmem:[#allocation6 + $0x30] sm:$0xff]
    %v54 = vld [vmem:[#allocation6 + $0x38] sm:$0xff]
    %v55 = vld [vmem:[#allocation6 + $0x40] sm:$0xff]
    %v56 = vld [vmem:[#allocation6 + $0x48] sm:$0xff]
    %v57 = vld [vmem:[#allocation6 + $0x50] sm:$0xff]
    %v58 = vld [vmem:[#allocation6 + $0x58] sm:$0xff]
    %v59 = vld [vmem:[#allocation6 + $0x60] sm:$0x3]
    %v60 = vld [vmem:[#allocation6 + $0x68] sm:$0x3]
    %v61 = vld [vmem:[#allocation3] sm:$0xff]
    %v62 = vld [vmem:[#allocation3 + $0x8] sm:$0xff]
    %v63 = vld [vmem:[#allocation3 + $0x10] sm:$0xff]
    %v64 = vld [vmem:[#allocation3 + $0x18] sm:$0xff]
    %v65 = vld [vmem:[#allocation3 + $0x20] sm:$0xff]
    %v66 = vld [vmem:[#allocation3 + $0x28] sm:$0xff]
    %v67 = vld [vmem:[#allocation3 + $0x30] sm:$0xff]
    %v68 = vld [vmem:[#allocation3 + $0x38] sm:$0xff]
    %v69 = vld [vmem:[#allocation3 + $0x40] sm:$0xff]
    %v70 = vld [vmem:[#allocation3 + $0x48] sm:$0xff]
    %v71 = vld [vmem:[#allocation3 + $0x50] sm:$0xff]
    %v72 = vld [vmem:[#allocation3 + $0x58] sm:$0xff]
    %v73 = vld [vmem:[#allocation3 + $0x60] sm:$0xff]
    %v74 = vld [vmem:[#allocation3 + $0x68] sm:$0xff]
    %v75 = vld [vmem:[#allocation3 + $0x70] sm:$0xff]
    %v76 = vld [vmem:[#allocation3 + $0x78] sm:$0xff]
    %v77 = vld [vmem:[#allocation3 + $0x80] sm:$0xff]
    %v78 = vld [vmem:[#allocation3 + $0x88] sm:$0xff]
    %v79 = vld [vmem:[#allocation3 + $0x90] sm:$0xff]
    %v80 = vld [vmem:[#allocation3 + $0x98] sm:$0xff]
    %v81 = vld [vmem:[#allocation3 + $0xa0] sm:$0xff]
    %v82 = vld [vmem:[#allocation3 + $0xa8] sm:$0xff]
    %v83 = vld [vmem:[#allocation3 + $0xb0] sm:$0xff]
    %v84 = vld [vmem:[#allocation3 + $0xb8] sm:$0xff]
    %v85 = vld [vmem:[#allocation3 + $0xc0] sm:$0xff]
    %v86 = vld [vmem:[#allocation3 + $0xc8] sm:$0xff]
    %v87 = vld [vmem:[#allocation3 + $0xd0] sm:$0xff]
    %v88 = vld [vmem:[#allocation3 + $0xd8] sm:$0xff]
    %v89 = vld [vmem:[#allocation3 + $0xe0] sm:$0xff]
    %v90 = vld [vmem:[#allocation3 + $0xe8] sm:$0xff]
    %v91 = vld [vmem:[#allocation3 + $0xf0] sm:$0xff]
    %v92 = vld [vmem:[#allocation3 + $0xf8] sm:$0x3]
    %vm93 = vcmask 998400
    %v95 = vsel %vm93, %v48, 0
    %v98 = vsel %vm93, %v50, 0
    %v101 = vsel %vm93, %v52, 0
    %v104 = vsel %vm93, %v54, 0
    %v107 = vsel %vm93, %v56, 0
    %v110 = vsel %vm93, %v58, 0
    %v113 = vsel %vm93, %v60, 0
    %vm115 = vcmask 1041408
    %v117 = vsel %vm115, %v92, 0
    %119 = vmatprep.subr.mxu0 0.0
    %120 = vmatpush1.msra.mxu0 %v76
    %121 = vmatprep.subr.mxu0 0.0
    %122 = vmatpush1.msra.mxu0 %v75
    %123 = vmatprep.subr.mxu0 0.0
    %124 = vmatpush1.msra.mxu0 %v74
    %125 = vmatprep.subr.mxu0 0.0
    %126 = vmatpush1.msra.mxu0 %v73
    %127 = vmatprep.subr.mxu0 0.0
    %128 = vmatpush1.msra.mxu0 %v72
    %129 = vmatprep.subr.mxu0 0.0
    %130 = vmatpush1.msra.mxu0 %v71
    %131 = vmatprep.subr.mxu0 0.0
    %132 = vmatpush1.msra.mxu0 %v70
    %133 = vmatprep.subr.mxu0 0.0
    %134 = vmatpush1.msra.mxu0 %v69
    %135 = vmatprep.subr.mxu0 0.0
    %136 = vmatpush1.msra.mxu0 %v68
    %137 = vmatprep.subr.mxu0 0.0
    %138 = vmatpush1.msra.mxu0 %v67
    %139 = vmatprep.subr.mxu0 0.0
    %140 = vmatpush1.msra.mxu0 %v66
    %141 = vmatprep.subr.mxu0 0.0
    %142 = vmatpush1.msra.mxu0 %v65
    %143 = vmatprep.subr.mxu0 0.0
    %144 = vmatpush1.msra.mxu0 %v64
    %145 = vmatprep.subr.mxu0 0.0
    %146 = vmatpush1.msra.mxu0 %v63
    %147 = vmatprep.subr.mxu0 0.0
    %148 = vmatpush1.msra.mxu0 %v62
    %149 = vmatprep.subr.mxu0 0.0
    %150 = vmatpush1.msra.mxu0 %v61
    %151 = vmatprep.subr.mxu0 0.0
    %152 = vmatpush2.msra.mxu0 %v117
    %153 = vmatprep.subr.mxu0 0.0
    %154 = vmatpush2.msra.mxu0 %v91
    %155 = vmatprep.subr.mxu0 0.0
    %156 = vmatpush2.msra.mxu0 %v90
    %157 = vmatprep.subr.mxu0 0.0
    %158 = vmatpush2.msra.mxu0 %v89
    %159 = vmatprep.subr.mxu0 0.0
    %160 = vmatpush2.msra.mxu0 %v88
    %161 = vmatprep.subr.mxu0 0.0
    %162 = vmatpush2.msra.mxu0 %v87
    %163 = vmatprep.subr.mxu0 0.0
    %164 = vmatpush2.msra.mxu0 %v86
    %165 = vmatprep.subr.mxu0 0.0
    %166 = vmatpush2.msra.mxu0 %v85
    %167 = vmatprep.subr.mxu0 0.0
    %168 = vmatpush2.msra.mxu0 %v84
    %169 = vmatprep.subr.mxu0 0.0
    %170 = vmatpush2.msra.mxu0 %v83
    %171 = vmatprep.subr.mxu0 0.0
    %172 = vmatpush2.msra.mxu0 %v82
    %173 = vmatprep.subr.mxu0 0.0
    %174 = vmatpush2.msra.mxu0 %v81
    %175 = vmatprep.subr.mxu0 0.0
    %176 = vmatpush2.msra.mxu0 %v80
    %177 = vmatprep.subr.mxu0 0.0
    %178 = vmatpush2.msra.mxu0 %v79
    %179 = vmatprep.subr.mxu0 0.0
    %180 = vmatpush2.msra.mxu0 %v78
    %181 = vmatprep.subr.mxu0 0.0
    %182 = vmatpush2.msra.mxu0 %v77
    %183 = vmatprep.mubr.f32.mxu0 %v95
    %184 = vmatmul.mubr.f32.gmra.mxu0 %v47
    %v185 = vpop.f32.mrf.mxu0
    %v186 = vadd.f32 0.0, %v185
    %v187 = vpop.f32.mrf.mxu0
    %188 = vmatprep.mubr.f32.mxu0 %v98
    %189 = vmatmul.mubr.f32.gmra.mxu0 %v49
    %v190 = vpop.f32.mrf.mxu0
    %v191 = vadd.f32 0.0, %v190
    %v192 = vpop.f32.mrf.mxu0
    %193 = vmatprep.mubr.f32.mxu0 %v101
    %194 = vmatmul.mubr.f32.gmra.mxu0 %v51
    %v195 = vpop.f32.mrf.mxu0
    %v196 = vadd.f32 0.0, %v195
    %v197 = vpop.f32.mrf.mxu0
    %198 = vmatprep.mubr.f32.mxu0 %v104
    %199 = vmatmul.mubr.f32.gmra.mxu0 %v53
    %v200 = vpop.f32.mrf.mxu0
    %v201 = vadd.f32 0.0, %v200
    %v202 = vpop.f32.mrf.mxu0
    %203 = vmatprep.mubr.f32.mxu0 %v107
    %204 = vmatmul.mubr.f32.gmra.mxu0 %v55
    %v205 = vpop.f32.mrf.mxu0
    %v206 = vadd.f32 0.0, %v205
    %v207 = vpop.f32.mrf.mxu0
    %208 = vmatprep.mubr.f32.mxu0 %v110
    %209 = vmatmul.mubr.f32.gmra.mxu0 %v57
    %v210 = vpop.f32.mrf.mxu0
    %v211 = vadd.f32 0.0, %v210
    %v212 = vpop.f32.mrf.mxu0
    %213 = vmatprep.mubr.f32.mxu0 %v113
    %214 = vmatmul.mubr.f32.gmra.mxu0 %v59
    %v215 = vpop.f32.mrf.mxu0
    %v216 = vadd.f32 0.0, %v215
    %v217 = vpop.f32.mrf.mxu0
    %218 = vdwg.mxu0
    %v219 = vxor.u32 %v186, 2147483648
    %v220 = vxor.u32 %v191, 2147483648
    %v221 = vxor.u32 %v196, 2147483648
    %v222 = vxor.u32 %v201, 2147483648
    %v223 = vxor.u32 %v206, 2147483648
    %v224 = vxor.u32 %v211, 2147483648
    %v225 = vxor.u32 %v216, 2147483648
    %v226 = vmul.f32 %v219, 1.442695
    %v227 = vpow.pop %v226
    %v228 = vmul.f32 %v220, 1.442695
    %v229 = vpow.pop %v228
    %v230 = vmul.f32 %v221, 1.442695
    %v231 = vpow.pop %v230
    %v232 = vmul.f32 %v222, 1.442695
    %v233 = vpow.pop %v232
    %v234 = vmul.f32 %v223, 1.442695
    %v235 = vpow.pop %v234
    %v236 = vmul.f32 %v224, 1.442695
    %v237 = vpow.pop %v236
    %v238 = vmul.f32 %v225, 1.442695
    %v239 = vpow.pop %v238
    %v240 = vadd.f32 %v227, 1.0
    %v241 = vadd.f32 %v229, 1.0
    %v242 = vadd.f32 %v231, 1.0
    %v243 = vadd.f32 %v233, 1.0
    %v244 = vadd.f32 %v235, 1.0
    %v245 = vadd.f32 %v237, 1.0
    %v246 = vadd.f32 %v239, 1.0
    %v247 = vrcp.pop %v240
    %v248 = vmul.f32 1.0, %v247
    %v249 = vrcp.pop %v241
    %v250 = vmul.f32 1.0, %v249
    %v251 = vrcp.pop %v242
    %v252 = vmul.f32 1.0, %v251
    %v253 = vrcp.pop %v243
    %v254 = vmul.f32 1.0, %v253
    %v255 = vrcp.pop %v244
    %v256 = vmul.f32 1.0, %v255
    %v257 = vrcp.pop %v245
    %v258 = vmul.f32 1.0, %v257
    %v259 = vrcp.pop %v246
    %v260 = vmul.f32 1.0, %v259
    %v261 = vld [vmem:[%s2] sm:$0x1]
    %s262 = sld [smem:[#allocation2]]
    %v263 = vstv %s262
    %vm264 = vcmask 408576
    %v266 = vsel %vm264, %v261, 0
    %v269 = vsel %vm115, %v260, 0
    %271 = vmatprep.subr.mxu0 0.0
    %272 = vmatpush1.msra.mxu0 0.0
    %273 = vmatprep.subr.mxu0 0.0
    %274 = vmatpush1.msra.mxu0 0.0
    %275 = vmatprep.subr.mxu0 0.0
    %276 = vmatpush1.msra.mxu0 0.0
    %277 = vmatprep.subr.mxu0 0.0
    %278 = vmatpush1.msra.mxu0 0.0
    %279 = vmatprep.subr.mxu0 0.0
    %280 = vmatpush1.msra.mxu0 0.0
    %281 = vmatprep.subr.mxu0 0.0
    %282 = vmatpush1.msra.mxu0 0.0
    %283 = vmatprep.subr.mxu0 0.0
    %284 = vmatpush1.msra.mxu0 0.0
    %285 = vmatprep.subr.mxu0 0.0
    %286 = vmatpush1.msra.mxu0 0.0
    %287 = vmatprep.subr.mxu0 0.0
    %288 = vmatpush1.msra.mxu0 0.0
    %289 = vmatprep.subr.mxu0 0.0
    %290 = vmatpush1.msra.mxu0 %v269
    %291 = vmatprep.subr.mxu0 0.0
    %292 = vmatpush1.msra.mxu0 %v258
    %293 = vmatprep.subr.mxu0 0.0
    %294 = vmatpush1.msra.mxu0 %v256
    %295 = vmatprep.subr.mxu0 0.0
    %296 = vmatpush1.msra.mxu0 %v254
    %297 = vmatprep.subr.mxu0 0.0
    %298 = vmatpush1.msra.mxu0 %v252
    %299 = vmatprep.subr.mxu0 0.0
    %300 = vmatpush1.msra.mxu0 %v250
    %301 = vmatprep.subr.mxu0 0.0
    %302 = vmatpush1.msra.mxu0 %v248
    %303 = vmatprep.subr.mxu0 0.0
    %304 = vmatpush2.msra.mxu0 0.0
    %305 = vmatprep.subr.mxu0 0.0
    %306 = vmatpush2.msra.mxu0 0.0
    %307 = vmatprep.subr.mxu0 0.0
    %308 = vmatpush2.msra.mxu0 0.0
    %309 = vmatprep.subr.mxu0 0.0
    %310 = vmatpush2.msra.mxu0 0.0
    %311 = vmatprep.subr.mxu0 0.0
    %312 = vmatpush2.msra.mxu0 0.0
    %313 = vmatprep.subr.mxu0 0.0
    %314 = vmatpush2.msra.mxu0 0.0
    %315 = vmatprep.subr.mxu0 0.0
    %316 = vmatpush2.msra.mxu0 0.0
    %317 = vmatprep.subr.mxu0 0.0
    %318 = vmatpush2.msra.mxu0 0.0
    %319 = vmatprep.subr.mxu0 0.0
    %320 = vmatpush2.msra.mxu0 0.0
    %321 = vmatprep.subr.mxu0 0.0
    %322 = vmatpush2.msra.mxu0 0.0
    %323 = vmatprep.subr.mxu0 0.0
    %324 = vmatpush2.msra.mxu0 0.0
    %325 = vmatprep.subr.mxu0 0.0
    %326 = vmatpush2.msra.mxu0 0.0
    %327 = vmatprep.subr.mxu0 0.0
    %328 = vmatpush2.msra.mxu0 0.0
    %329 = vmatprep.subr.mxu0 0.0
    %330 = vmatpush2.msra.mxu0 0.0
    %331 = vmatprep.subr.mxu0 0.0
    %332 = vmatpush2.msra.mxu0 0.0
    %333 = vmatprep.subr.mxu0 0.0
    %334 = vmatpush2.msra.mxu0 0.0
    %335 = vmatprep.mubr.f32.mxu0 0.0
    %336 = vmatmul.mubr.f32.gmra.mxu0 %v266
    %v337 = vpop.f32.mrf.mxu0
    %v338 = vadd.f32 %v263, %v337
    %v339 = vpop.f32.mrf.mxu0
    %340 = vdwg.mxu0
    %341 = vst [vmem:[#allocation8] sm:$0x1] %v338
    // Predicated region
    $region26: #{tpu_custom_call.1} parent=1 // pred_check
      _
    $region27: #{tpu_custom_call.1} parent=1 // pred_check_branch
      %343 = sbr.rel (0) target = $region29
    $region28: #{tpu_custom_call.1} parent=1 // pred_region
      %s345 = ssub.s32 16, 16
      %346 = vsyncadd [#allocation5], %s345
      %s348 = sshll.u32 [#allocation8], 4
      %s349 = int_to_ptr.vmem [resolvable:$true] %s348
      %351 = dma.vmem_to_hbm [thread:$0]  %s349, 16, %s4, [#allocation5]
    $region29: #{tpu_custom_call.1} parent=1 // pred_fallthru
      _
    // Predicated region
    $region30: #{tpu_custom_call.1} parent=1 // pred_check
      _
    $region31: #{tpu_custom_call.1} parent=1 // pred_check_branch
      %353 = sbr.rel (0) target = $region33
    $region32: #{tpu_custom_call.1} parent=1 // pred_region
      %354 = dma.done [#allocation5], 16
    $region33: #{tpu_custom_call.1} parent=1 // pred_fallthru
      _
    %355 = vsyncpa [#allocation4], 1
    %356 = vsyncpa [#allocation7], 1
    %357 = vsyncpa [#allocation5], 1

</llo_original>
